<compile_context>
chip_gen: v7x
topology: tpu7x:2x2x1
jax: 0.10.0
libtpu: 0.0.40
codegen_flags: <defaults>
</compile_context>

<pallas_src>
import functools
from typing import NamedTuple, Optional

import jax
import jax.numpy as jnp
from jax.experimental import pallas as pl
from jax.experimental.pallas import tpu as pltpu

_MIB = 1024 * 1024

_TN_CANDIDATES = (2048, 1536, 1024, 768, 512, 384, 256, 128)
_TK_CANDIDATES = (4096, 3072, 2048, 1536, 1024, 768, 512, 384, 256, 128)


def _round_up(x, m):
    return ((x + m - 1) // m) * m


def _vmem_capacity_bytes():
    """Physical VMEM per TensorCore; conservative 64 MiB fallback (v7x)."""
    try:
        return int(pltpu.get_tpu_info().vmem_capacity_bytes)
    except Exception:
        return 64 * _MIB


# ---------------------------------------------------------------------------
# Kernels
# ---------------------------------------------------------------------------

def _fc_kernel_ktiled(x_ref, w_ref, b_ref, o_ref, acc_ref, *, use_relu):
    """Grid (Mg, Ng, Kg>1): f32 VMEM accumulator, init/finalize on K axis."""
    k = pl.program_id(2)

    @pl.when(k == 0)
    def _():
        acc_ref[...] = jnp.zeros_like(acc_ref)

    acc_ref[...] += jnp.dot(
        x_ref[...], w_ref[...], preferred_element_type=jnp.float32)

    @pl.when(k == pl.num_programs(2) - 1)
    def _():
        y = acc_ref[...] + b_ref[...].astype(jnp.float32)
        if use_relu:
            y = jnp.maximum(y, 0.0)
        o_ref[...] = y.astype(o_ref.dtype)


def _fc_kernel_single_k(x_ref, w_ref, b_ref, o_ref, *, use_relu):
    """Grid (Mg, Ng): whole K fits one tile -> no scratch, no pl.when."""
    y = jnp.dot(x_ref[...], w_ref[...], preferred_element_type=jnp.float32)
    y = y + b_ref[...].astype(jnp.float32)
    if use_relu:
        y = jnp.maximum(y, 0.0)
    o_ref[...] = y.astype(o_ref.dtype)


# ---------------------------------------------------------------------------
# Parameter preparation (one-time, off the hot path)
# ---------------------------------------------------------------------------

class FCParams(NamedTuple):
    w_kn: jax.Array       # [k_pad, n_pad], compute dtype, pre-padded to 128s
    bias: jax.Array       # [1, n_pad], float32, pre-padded
    in_features: int
    out_features: int


def prepare_fc_params(weight, bias, *, compute_dtype: Optional[jnp.dtype] = jnp.bfloat16):
    """One-time prep: transpose, cast, pad to 128-lane granule.

    weight: [out_features, in_features]  (PyTorch nn.Linear convention)
    bias:   [out_features]
    compute_dtype: MXU input dtype (default bf16; pass None for strict f32).
    """
    out_features, in_features = weight.shape
    k_pad = _round_up(in_features, 128)
    n_pad = _round_up(out_features, 128)

    w_kn = weight.T
    if compute_dtype is not None:
        w_kn = w_kn.astype(compute_dtype)
    if (k_pad, n_pad) != (in_features, out_features):
        w_kn = jnp.pad(w_kn, ((0, k_pad - in_features),
                              (0, n_pad - out_features)))

    bias2d = bias.astype(jnp.float32).reshape(1, -1)
    if n_pad != out_features:
        bias2d = jnp.pad(bias2d, ((0, 0), (0, n_pad - out_features)))

    return FCParams(w_kn=w_kn, bias=bias2d,
                    in_features=in_features, out_features=out_features)


# ---------------------------------------------------------------------------
# Tiling helpers
# ---------------------------------------------------------------------------

def _pick_tile(dim_pad, cap, candidates):
    """Largest tile <= cap that exactly divides dim_pad (dim_pad % 128 == 0)."""
    if dim_pad <= cap:
        return dim_pad
    for c in candidates:
        if c <= cap and dim_pad % c == 0:
            return c
    return 128


def _next_smaller_tile(dim_pad, cur, candidates):
    for c in candidates:
        if c < cur and dim_pad % c == 0:
            return c
    return 128


def _pick_tile_m(m, granule):
    """Large, aligned row tiles with bounded padding waste."""
    m_al = _round_up(max(m, 1), granule)
    if m_al <= 512:
        return m_al
    for cand in (512, 384, 256, 128):
        waste = _round_up(m, cand) - m
        if waste <= max(m // 8, cand // 2):
            return cand
    return 128


# ---------------------------------------------------------------------------
# Forward
# ---------------------------------------------------------------------------

def fc_forward(x, params: FCParams, *, use_relu=True, dropout_p=0.0,
               tm=None, tn=None, tk=None):
    """Pallas implementation of FC.forward (eval mode).

    x:      [..., in_features]
    params: output of prepare_fc_params (weight pre-transposed/padded/cast).
    """
    w_kn, bias2d = params.w_kn, params.bias
    in_features, out_features = params.in_features, params.out_features
    k_pad, n_pad = w_kn.shape
    assert bias2d.shape == (1, n_pad)
    assert x.shape[-1] == in_features

    lead_shape = x.shape[:-1]
    m = 1
    for d in lead_shape:
        m *= d
    out_dtype = x.dtype

    compute_dtype = w_kn.dtype
    in_bytes = jnp.dtype(compute_dtype).itemsize
    out_bytes = jnp.dtype(out_dtype).itemsize
    granule = {4: 8, 2: 16, 1: 32}.get(in_bytes, 8)   # sublane packing granule

    # ---- generation-aware tile selection --------------------------------
    vmem_cap = _vmem_capacity_bytes()
    budget = min(int(vmem_cap * 0.7), 80 * _MIB)      # tile footprint budget
    big_vmem = budget > 48 * _MIB                     # v5e / v6e (128 MiB)

    if tm is None:
        tm = _pick_tile_m(m, granule)
    else:
        tm = _round_up(tm, granule)
    if tn is None:
        cap_tn = 2048 if big_vmem else 1024
        tn = _pick_tile(n_pad, cap_tn, _TN_CANDIDATES)
    if tk is None:
        if in_bytes <= 2:
            cap_tk = 4096 if big_vmem else 2048
        else:
            cap_tk = 2048 if big_vmem else 1024
        tk = _pick_tile(k_pad, cap_tk, _TK_CANDIDATES)
    assert n_pad % tn == 0 and k_pad % tk == 0, \
        "tn/tk must divide the 128-padded feature dims"

    def footprint(tm_, tn_, tk_):
        # Conservative: double-buffered x/w/bias/output tiles + f32 accumulator.
        return (2 * (tm_ * tk_ + tk_ * tn_) * in_bytes
                + 2 * tn_ * 4
                + 2 * tm_ * tn_ * out_bytes
                + tm_ * tn_ * 4)

    # Shrink tiles (keeping exact divisibility) if footprint exceeds budget.
    while footprint(tm, tn, tk) > budget and (tk > 128 or tn > 128):
        if tk >= tn and tk > 128:
            tk = _next_smaller_tile(k_pad, tk, _TK_CANDIDATES)
        elif tn > 128:
            tn = _next_smaller_tile(n_pad, tn, _TN_CANDIDATES)
        else:
            break

    m_pad = _round_up(m, tm)

    # v7x megacore: guarantee >= 2 blocks on a "parallel" axis when possible.
    if (m_pad // tm) == 1 and (n_pad // tn) == 1 and n_pad >= 256:
        tn = _next_smaller_tile(n_pad, tn, _TN_CANDIDATES)

    mg, ng, kg = m_pad // tm, n_pad // tn, k_pad // tk

    # ---- per-call x prep (cast + zero-pad; weight untouched) -------------
    x2d = x.reshape(m, in_features)
    if x2d.dtype != compute_dtype:
        x2d = x2d.astype(compute_dtype)
    if (m_pad, k_pad) != (m, in_features):
        x2d = jnp.pad(x2d, ((0, m_pad - m), (0, k_pad - in_features)))

    # ---- VMEM limit / cost hint ------------------------------------------
    fp = footprint(tm, tn, tk)
    vmem_limit = int(min(int(vmem_cap * 0.875),
                         max(int(fp * 1.5), 32 * _MIB)))

    cost = pl.CostEstimate(
        flops=2 * m_pad * k_pad * n_pad,
        transcendentals=0,
        bytes_accessed=(m_pad * k_pad * in_bytes * ng     # x re-streamed per N tile
                        + k_pad * n_pad * in_bytes * mg   # w re-streamed per M tile
                        + n_pad * 4
                        + m_pad * n_pad * out_bytes),
    )

    # ---- pallas_call ------------------------------------------------------
    if kg == 1:
        kernel = functools.partial(_fc_kernel_single_k, use_relu=use_relu)
        grid_spec = pltpu.PrefetchScalarGridSpec(
            num_scalar_prefetch=0,
            grid=(mg, ng),
            in_specs=[
                pl.BlockSpec((tm, tk), lambda i, j: (i, 0)),
                pl.BlockSpec((tk, tn), lambda i, j: (0, j)),
                pl.BlockSpec((1, tn), lambda i, j: (0, j)),
            ],
            out_specs=pl.BlockSpec((tm, tn), lambda i, j: (i, j)),
        )
        dim_sem = ("parallel", "parallel")
    else:
        kernel = functools.partial(_fc_kernel_ktiled, use_relu=use_relu)
        grid_spec = pltpu.PrefetchScalarGridSpec(
            num_scalar_prefetch=0,
            grid=(mg, ng, kg),
            in_specs=[
                pl.BlockSpec((tm, tk), lambda i, j, k: (i, k)),
                pl.BlockSpec((tk, tn), lambda i, j, k: (k, j)),
                pl.BlockSpec((1, tn), lambda i, j, k: (0, j)),
            ],
            out_specs=pl.BlockSpec((tm, tn), lambda i, j, k: (i, j)),
            scratch_shapes=[pltpu.VMEM((tm, tn), jnp.float32)],
        )
        dim_sem = ("parallel", "parallel", "arbitrary")

    out2d = pl.pallas_call(
        kernel,
        out_shape=jax.ShapeDtypeStruct((m_pad, n_pad), out_dtype),
        grid_spec=grid_spec,
        compiler_params=pltpu.CompilerParams(
            dimension_semantics=dim_sem,
            vmem_limit_bytes=vmem_limit,
        ),
        cost_estimate=cost,
    )(x2d, w_kn, bias2d)

    # Eval-mode dropout (any p) is the identity.
    # TODO(synk): training-mode dropout via pltpu.prng_seed / prng_random_bits.
    del dropout_p
    out2d = out2d[:m, :out_features]
    return out2d.reshape(*lead_shape, out_features)


if __name__ == "__main__":
    # Module config (synthetic, deterministic init — no checkpoint load).
    in_features = 32
    out_features = 64
    use_relu = True
    dropout_p = 0.0

    # Small input: batch=2, seq=8, hidden=in_features=32.
    key = jax.random.PRNGKey(0)
    kx, kw, kb = jax.random.split(key, 3)
    x = jax.random.normal(kx, (2, 8, in_features), dtype=jnp.float32)

    # nn.Linear default init: U(-1/sqrt(in), 1/sqrt(in)) for weight and bias.
    bound = 1.0 / (in_features ** 0.5)
    weight = jax.random.uniform(
        kw, (out_features, in_features), minval=-bound, maxval=bound,
        dtype=jnp.float32)
    bias = jax.random.uniform(
        kb, (out_features,), minval=-bound, maxval=bound, dtype=jnp.float32)

    ref = jnp.maximum(x @ weight.T + bias, 0.0)

    # Default fast path: bf16 MXU inputs, f32 accumulation + f32 bias/ReLU.
    params_bf16 = prepare_fc_params(weight, bias)
    out_bf16 = jax.block_until_ready(
        fc_forward(x, params_bf16, use_relu=use_relu, dropout_p=dropout_p))
    assert out_bf16.shape == (2, 8, out_features), out_bf16.shape
    assert out_bf16.dtype == x.dtype
    assert jnp.allclose(out_bf16, ref, atol=3e-2, rtol=5e-2), \
        "bf16 path mismatch vs reference"

    # Strict-f32 opt-out path: bit-for-bit-tight against the JAX reference.
    params_f32 = prepare_fc_params(weight, bias, compute_dtype=None)
    out_f32 = jax.block_until_ready(
        fc_forward(x, params_f32, use_relu=use_relu, dropout_p=dropout_p))
    assert out_f32.shape == (2, 8, out_features), out_f32.shape
    assert jnp.allclose(out_f32, ref, atol=1e-5, rtol=1e-5), \
        "f32 path mismatch vs reference"

    print("KERNEL_OK")
</pallas_src>

<mosaic_0001>
module attributes {stable_mosaic.version = 11 : i64} {
  func.func @_fc_kernel_single_k(%arg0: i32, %arg1: i32, %arg2: memref<16x128xbf16, #tpu.memory_space<vmem>>, %arg3: memref<128x128xbf16, #tpu.memory_space<vmem>>, %arg4: memref<1x128xf32, #tpu.memory_space<vmem>>, %arg5: memref<16x128xf32, #tpu.memory_space<vmem>>) attributes {dimension_semantics = [#tpu.dimension_semantics<parallel>, #tpu.dimension_semantics<parallel>], iteration_bounds = array<i64: 1, 1>, scalar_prefetch = 0 : i64, scratch_operands = 0 : i64, tpu.core_type = #tpu.core_type<tc>, window_params = [{transform_indices = @transform_0, window_bounds = array<i64: 16, 128>}, {transform_indices = @transform_1, window_bounds = array<i64: 128, 128>}, {transform_indices = @transform_2, window_bounds = array<i64: 1, 128>}, {transform_indices = @transform_3, window_bounds = array<i64: 16, 128>}]} {
    %c0 = arith.constant 0 : index
    %c0_0 = arith.constant 0 : index
    %0 = vector.load %arg2[%c0, %c0_0] : memref<16x128xbf16, #tpu.memory_space<vmem>>, vector<16x128xbf16>
    %c0_1 = arith.constant 0 : index
    %c0_2 = arith.constant 0 : index
    %1 = vector.load %arg3[%c0_1, %c0_2] : memref<128x128xbf16, #tpu.memory_space<vmem>>, vector<128x128xbf16>
    %cst = arith.constant dense<0.000000e+00> : vector<16x128xf32>
    %2 = tpu.matmul %0, %1, %cst {dimension_numbers = #tpu.dot_dimension_numbers<[1], [0], [0], [1], [0, 0, 1, 1], [], []>} : vector<16x128xbf16>, vector<128x128xbf16>, vector<16x128xf32> -> vector<16x128xf32>
    %c0_3 = arith.constant 0 : index
    %c0_4 = arith.constant 0 : index
    %3 = vector.load %arg4[%c0_3, %c0_4] : memref<1x128xf32, #tpu.memory_space<vmem>>, vector<1x128xf32>
    %4 = vector.broadcast %3 : vector<1x128xf32> to vector<16x128xf32>
    %5 = arith.addf %2, %4 : vector<16x128xf32>
    %cst_5 = arith.constant 0.000000e+00 : f32
    %6 = vector.broadcast %cst_5 : f32 to vector<16x128xf32>
    %7 = arith.maximumf %5, %6 : vector<16x128xf32>
    %c0_6 = arith.constant 0 : index
    %c0_7 = arith.constant 0 : index
    %8 = vector.load %arg5[%c0_6, %c0_7] : memref<16x128xf32, #tpu.memory_space<vmem>>, vector<16x128xf32>
    tpu.vector_store %arg5[%c0_6, %c0_7], %7 {strides = array<i32>} : memref<16x128xf32, #tpu.memory_space<vmem>>, vector<16x128xf32>,
    return
  }
  func.func @transform_0(%arg0: i32, %arg1: i32) -> (i32, i32) {
    %c0_i32 = arith.constant 0 : i32
    %c0_i32_0 = arith.constant 0 : i32
    return %arg0, %c0_i32 : i32, i32
  }
  func.func @transform_1(%arg0: i32, %arg1: i32) -> (i32, i32) {
    %c0_i32 = arith.constant 0 : i32
    %c0_i32_0 = arith.constant 0 : i32
    return %c0_i32, %arg1 : i32, i32
  }
  func.func @transform_2(%arg0: i32, %arg1: i32) -> (i32, i32) {
    %c0_i32 = arith.constant 0 : i32
    %c0_i32_0 = arith.constant 0 : i32
    return %c0_i32, %arg1 : i32, i32
  }
  func.func @transform_3(%arg0: i32, %arg1: i32) -> (i32, i32) {
    %c0_i32 = arith.constant 0 : i32
    return %arg0, %arg1 : i32, i32
  }
}

</mosaic_0001>

<llo_original>
// kernel: tpu_custom_call.1
$region0: #{tpu_custom_call.1}
  #allocation0 [shape = 'u32[]', space=smem, size = 0x4, offset = 0x4, fixed_abs, tag = 'smem constant byte address 0x4 - core index']
  #allocation1 [shape = 'u32[144,128]{1,0:T(1,128)}', space=vmem, size = 0x12000, scoped, tag = 'internal scratch']
  %s0 = inlined_call_operand.hbm [shape: bf16[16,128], index: 0, kind: input, shape index: {}]
  %s1 = inlined_call_operand.hbm [shape: bf16[128,128], index: 1, kind: input, shape index: {}]
  %s2 = inlined_call_operand.vmem [shape: f32[1,128], index: 2, kind: input, shape index: {}]
  %s3 = inlined_call_operand.hbm [shape: f32[16,128], index: 3, kind: output, shape index: {}]
  %s4 = sld [smem:[#allocation0]]
  $region30: #{tpu_custom_call.1} parent=0
    _
  %s6 = ssub.s32 1, %s4
  %s7 = scalar_select 0, %s6, %s4
  $region1: #{tpu_custom_call.1} parent=0
    #allocation2 [shape = 'u8[4096]{0}', space=vmem, size = 0x1000, scoped, tag = 'input window, operand 0, single buffered']
    #allocation3 [shape = 's32[1]{0}', space=sflag, size = 0x4, scoped, tag = 'scoped memory for tpu_custom_call.1']
    #allocation4 [shape = 's32[1]{0}', space=sflag, size = 0x4, scoped, tag = 'scoped memory for tpu_custom_call.1']
    #allocation5 [shape = 'u8[32768]{0}', space=vmem, size = 0x8000, scoped, tag = 'input window, operand 1, single buffered']
    #allocation6 [shape = 's32[1]{0}', space=sflag, size = 0x4, scoped, tag = 'scoped memory for tpu_custom_call.1']
    #allocation7 [shape = 'u8[8192]{0}', space=vmem, size = 0x2000, scoped, tag = 'output window, operand 0, single buffered']
    %8 = vsyncpa [#allocation3], 0
    %9 = vsyncpa [#allocation6], 0
    %10 = vsyncpa [#allocation4], 0
    // Predicated region
    $region2: #{tpu_custom_call.1} parent=1 // pred_check
      _
    $region3: #{tpu_custom_call.1} parent=1 // pred_check_branch
      %12 = sbr.rel (0) target = $region5
    $region4: #{tpu_custom_call.1} parent=1 // pred_region
      %s14 = ssub.s32 128, 128
      %15 = vsyncadd [#allocation3], %s14
      %s16 = sshll.u32 [#allocation2], 4
      %s17 = int_to_ptr.vmem [resolvable:$true] %s16
      %22 = dma.hbm_to_vmem [thread:$0]  %s0, 128, %s17, [#allocation3], 64, 64, 4
    $region5: #{tpu_custom_call.1} parent=1 // pred_fallthru
      _
    // Predicated region
    $region6: #{tpu_custom_call.1} parent=1 // pred_check
      _
    $region7: #{tpu_custom_call.1} parent=1 // pred_check_branch
      %24 = sbr.rel (0) target = $region9
    $region8: #{tpu_custom_call.1} parent=1 // pred_region
      %s26 = ssub.s32 1024, 1024
      %27 = vsyncadd [#allocation6], %s26
      %s28 = sshll.u32 [#allocation5], 4
      %s29 = int_to_ptr.vmem [resolvable:$true] %s28
      %34 = dma.hbm_to_vmem [thread:$0]  %s1, 1024, %s29, [#allocation6], 64, 64, 4
    $region9: #{tpu_custom_call.1} parent=1 // pred_fallthru
      _
    // Predicated region
    $region10: #{tpu_custom_call.1} parent=1 // pred_check
      _
    $region11: #{tpu_custom_call.1} parent=1 // pred_check_branch
      %36 = sbr.rel (0) target = $region13
    $region12: #{tpu_custom_call.1} parent=1 // pred_region
      _
    $region13: #{tpu_custom_call.1} parent=1 // pred_fallthru
      _
    // Predicated region
    $region14: #{tpu_custom_call.1} parent=1 // pred_check
      _
    $region15: #{tpu_custom_call.1} parent=1 // pred_check_branch
      %38 = sbr.rel (0) target = $region17
    $region16: #{tpu_custom_call.1} parent=1 // pred_region
      %39 = dma.done [#allocation3], 128
    $region17: #{tpu_custom_call.1} parent=1 // pred_fallthru
      _
    // Predicated region
    $region18: #{tpu_custom_call.1} parent=1 // pred_check
      _
    $region19: #{tpu_custom_call.1} parent=1 // pred_check_branch
      %41 = sbr.rel (0) target = $region21
    $region20: #{tpu_custom_call.1} parent=1 // pred_region
      %42 = dma.done [#allocation6], 1024
    $region21: #{tpu_custom_call.1} parent=1 // pred_fallthru
      _
    %v44 = vld [vmem:[#allocation2] sm:$0xf]
    %v45 = vld [vmem:[#allocation2 + $0x4] sm:$0xf]
    %v46 = vld [vmem:[#allocation5] sm:$0xf]
    %v47 = vld [vmem:[#allocation5 + $0x4] sm:$0xf]
    %v48 = vld [vmem:[#allocation5 + $0x8] sm:$0xf]
    %v49 = vld [vmem:[#allocation5 + $0xc] sm:$0xf]
    %v50 = vld [vmem:[#allocation5 + $0x10] sm:$0xf]
    %v51 = vld [vmem:[#allocation5 + $0x14] sm:$0xf]
    %v52 = vld [vmem:[#allocation5 + $0x18] sm:$0xf]
    %v53 = vld [vmem:[#allocation5 + $0x1c] sm:$0xf]
    %v54 = vld [vmem:[#allocation5 + $0x20] sm:$0xf]
    %v55 = vld [vmem:[#allocation5 + $0x24] sm:$0xf]
    %v56 = vld [vmem:[#allocation5 + $0x28] sm:$0xf]
    %v57 = vld [vmem:[#allocation5 + $0x2c] sm:$0xf]
    %v58 = vld [vmem:[#allocation5 + $0x30] sm:$0xf]
    %v59 = vld [vmem:[#allocation5 + $0x34] sm:$0xf]
    %v60 = vld [vmem:[#allocation5 + $0x38] sm:$0xf]
    %v61 = vld [vmem:[#allocation5 + $0x3c] sm:$0xf]
    %v62 = vld [vmem:[%s2] sm:$0x1]
    %v64 = vlaneseq
    %v65 = vshrl.u32 %v64, 7
    %v66 = vsub.s32 0, %v65
    %v67 = vrot.slane %v62, %v66
    %v71 = vunpack.c.l.b16 %v44
    %v72 = vunpack.c.l.b16 %v45
    %v73 = vpack.c.b16 %v72, %v71
    %v91 = vunpack.c.l.b16 %v46
    %v92 = vunpack.c.l.b16 %v47
    %v93 = vunpack.c.l.b16 %v48
    %v94 = vunpack.c.l.b16 %v49
    %v95 = vunpack.c.l.b16 %v50
    %v96 = vunpack.c.l.b16 %v51
    %v97 = vunpack.c.l.b16 %v52
    %v98 = vunpack.c.l.b16 %v53
    %v99 = vunpack.c.l.b16 %v54
    %v100 = vunpack.c.l.b16 %v55
    %v101 = vunpack.c.l.b16 %v56
    %v102 = vunpack.c.l.b16 %v57
    %v103 = vunpack.c.l.b16 %v58
    %v104 = vunpack.c.l.b16 %v59
    %v105 = vunpack.c.l.b16 %v60
    %v106 = vunpack.c.l.b16 %v61
    %v107 = vpack.c.b16 %v92, %v91
    %v108 = vpack.c.b16 %v94, %v93
    %v109 = vpack.c.b16 %v96, %v95
    %v110 = vpack.c.b16 %v98, %v97
    %v111 = vpack.c.b16 %v100, %v99
    %v112 = vpack.c.b16 %v102, %v101
    %v113 = vpack.c.b16 %v104, %v103
    %v114 = vpack.c.b16 %v106, %v105
    %123 = vmatprep.subr.bf16.mxu0 0
    %124 = vmatpush1.bf16.msra.mxu0 %v107
    %125 = vmatprep.subr.bf16.mxu0 0
    %126 = vmatpush1.bf16.msra.mxu0 %v108
    %127 = vmatprep.subr.bf16.mxu0 0
    %128 = vmatpush1.bf16.msra.mxu0 %v109
    %129 = vmatprep.subr.bf16.mxu0 0
    %130 = vmatpush1.bf16.msra.mxu0 %v110
    %131 = vmatprep.subr.bf16.mxu0 0
    %132 = vmatpush1.bf16.msra.mxu0 %v111
    %133 = vmatprep.subr.bf16.mxu0 0
    %134 = vmatpush1.bf16.msra.mxu0 %v112
    %135 = vmatprep.subr.bf16.mxu0 0
    %136 = vmatpush1.bf16.msra.mxu0 %v113
    %137 = vmatprep.subr.bf16.mxu0 0
    %138 = vmatpush1.bf16.msra.mxu0 %v114
    %139 = vmatprep.subr.bf16.mxu0 0
    %140 = vmatpush1.bf16.msra.mxu0 0
    %141 = vmatprep.subr.bf16.mxu0 0
    %142 = vmatpush1.bf16.msra.mxu0 0
    %143 = vmatprep.subr.bf16.mxu0 0
    %144 = vmatpush1.bf16.msra.mxu0 0
    %145 = vmatprep.subr.bf16.mxu0 0
    %146 = vmatpush1.bf16.msra.mxu0 0
    %147 = vmatprep.subr.bf16.mxu0 0
    %148 = vmatpush1.bf16.msra.mxu0 0
    %149 = vmatprep.subr.bf16.mxu0 0
    %150 = vmatpush1.bf16.msra.mxu0 0
    %151 = vmatprep.subr.bf16.mxu0 0
    %152 = vmatpush1.bf16.msra.mxu0 0
    %153 = vmatprep.subr.bf16.mxu0 0
    %154 = vmatpush1.bf16.msra.mxu0 0
    %155 = vmatprep.mubr.bf16.mxu0 0
    %156 = vmatmul.mubr.bf16.gmra.mrb[0].mxu0 %v73
    %v157 = vpop.f32.mrb[0].mxu0
    %v158 = vadd.f32 %v67, %v157
    %v159 = vpop.f32.mrb[0].mxu0
    %v160 = vpop.f32.mrb[0].mxu0
    %v161 = vadd.f32 %v67, %v160
    %v162 = vpop.f32.mrb[0].mxu0
    %163 = vdwg.mxu0
    %v164 = vmax.f32 %v158, 0.0
    %v165 = vmax.f32 %v161, 0.0
    %166 = vst [vmem:[#allocation7] sm:$0xff] %v164
    %167 = vst [vmem:[#allocation7 + $0x8] sm:$0xff] %v165
    // Predicated region
    $region22: #{tpu_custom_call.1} parent=1 // pred_check
      _
    $region23: #{tpu_custom_call.1} parent=1 // pred_check_branch
      %169 = sbr.rel (0) target = $region25
    $region24: #{tpu_custom_call.1} parent=1 // pred_region
      %s171 = ssub.s32 256, 256
      %172 = vsyncadd [#allocation4], %s171
      %s173 = sshll.u32 [#allocation7], 4
      %s174 = int_to_ptr.vmem [resolvable:$true] %s173
      %179 = dma.vmem_to_hbm [thread:$0]  %s174, 256, %s3, [#allocation4], 128, 128, 8
    $region25: #{tpu_custom_call.1} parent=1 // pred_fallthru
      _
    // Predicated region
    $region26: #{tpu_custom_call.1} parent=1 // pred_check
      _
    $region27: #{tpu_custom_call.1} parent=1 // pred_check_branch
      %181 = sbr.rel (0) target = $region29
    $region28: #{tpu_custom_call.1} parent=1 // pred_region
      %182 = dma.done [#allocation4], 256
    $region29: #{tpu_custom_call.1} parent=1 // pred_fallthru
      _
    %183 = vsyncpa [#allocation3], 1
    %184 = vsyncpa [#allocation6], 1
    %185 = vsyncpa [#allocation4], 1

</llo_original>
